<compile_context>
chip_gen: v7x
topology: tpu7x:2x2x1
jax: 0.10.0
libtpu: 0.0.40
codegen_flags: <defaults>
</compile_context>

<pallas_src>
import functools

import jax
import jax.numpy as jnp
from jax.experimental import pallas as pl
from jax.experimental.pallas import tpu as pltpu


def _vfl_kernel(pred_ref, gt_ref, lbl_ref, out_ref, *,
                alpha, gamma, valid_rows, tile_rows):
    x = pred_ref[...].astype(jnp.float32)    # logits
    z = gt_ref[...].astype(jnp.float32)      # soft targets (gt_score)
    lbl = lbl_ref[...].astype(jnp.float32)   # binary label

    # One exp per element, shared between sigmoid and the BCE log term.
    e = jnp.exp(-jnp.abs(x))                       # exp(-|x|) in (0, 1]
    inv = pl.reciprocal(1.0 + e, approx=True)      # EUP, frees VALU slots
    sig = jnp.where(x >= 0.0, inv, e * inv)        # sigmoid(x)

    if gamma == 2.0:
        focal = sig * sig                    # avoid pow -> exp/log on the EUP
    elif gamma == 1.0:
        focal = sig
    else:
        focal = sig ** gamma                 # generic (non-integer) gamma

    # weight = alpha*focal*(1-lbl) + z*lbl, rewritten to save two VALU muls.
    t = alpha * focal
    weight = t + lbl * (z - t)

    # Numerically stable BCE with logits (== F.binary_cross_entropy_with_logits):
    #   max(x, 0) - x*z + log(1 + exp(-|x|))
    bce = jnp.maximum(x, 0.0) - x * z + jnp.log1p(e)
    term = bce * weight

    if valid_rows % tile_rows == 0:
        # All tiles are full: no mask anywhere on the hot path.
        out_ref[...] = jnp.sum(term, axis=0, keepdims=True)
    else:
        # Only the final (partial) tile pays for the iota/compare/select.
        i = pl.program_id(0)
        last = pl.num_programs(0) - 1

        @pl.when(i != last)
        def _():
            out_ref[...] = jnp.sum(term, axis=0, keepdims=True)

        @pl.when(i == last)
        def _():
            rows = jax.lax.broadcasted_iota(jnp.int32, term.shape, 0)
            masked = jnp.where(i * tile_rows + rows < valid_rows, term, 0.0)
            out_ref[...] = jnp.sum(masked, axis=0, keepdims=True)


def varifocal_loss(pred_score, gt_score, label, alpha=0.75, gamma=2.0, *,
                   target_block_bytes=4 << 20):
    """Pallas implementation of VarifocalLoss.forward. Returns a scalar f32."""
    assert pred_score.shape == gt_score.shape == label.shape
    n = pred_score.size

    pred_f = pred_score.reshape(-1)
    gt_f = gt_score.reshape(-1)
    lbl_f = label.reshape(-1)

    # Lane-dense layout: widest lane count (multiple of 128) that divides the
    # element count; any remainder (< lane elements) is handled outside the
    # kernel instead of materializing padded copies of all three inputs.
    lane = next((c for c in (512, 256, 128) if n % c == 0), 128)
    main = (n // lane) * lane
    rem = n - main

    loss = jnp.zeros((), jnp.float32)

    if main:
        m = main // lane
        pred2 = pred_f[:main].reshape(m, lane)
        gt2 = gt_f[:main].reshape(m, lane)
        lbl2 = lbl_f[:main].reshape(m, lane)

        # ~4 MiB f32 per input block; rows a multiple of 8 (or full extent).
        tm = max(8, (target_block_bytes // (4 * lane)) // 8 * 8)
        if m <= tm:
            if m >= 16:
                # Split into >= 2 grid steps so both v7x TensorCores get work.
                half = -(-m // 2)
                tm = min(-(-half // 8) * 8, m)
            else:
                tm = m          # tiny input: single full-extent tile
        grid = (pl.cdiv(m, tm),)

        kernel = functools.partial(_vfl_kernel, alpha=float(alpha),
                                   gamma=float(gamma), valid_rows=m,
                                   tile_rows=tm)

        in_spec = pl.BlockSpec((tm, lane), lambda i: (i, 0))
        partials = pl.pallas_call(
            kernel,
            out_shape=jax.ShapeDtypeStruct((grid[0], lane), jnp.float32),
            grid_spec=pltpu.PrefetchScalarGridSpec(
                num_scalar_prefetch=0,
                grid=grid,
                in_specs=[in_spec, in_spec, in_spec],
                out_specs=pl.BlockSpec((1, lane), lambda i: (i, 0)),
            ),
            compiler_params=pltpu.CompilerParams(
                dimension_semantics=("parallel",),   # independent tiles
                vmem_limit_bytes=40 << 20,           # 24 MiB live buffers + headroom
            ),
        )(pred2, gt2, lbl2)

        # One tiny cross-tile / cross-lane reduction outside the hot loop.
        loss = loss + jnp.sum(partials)

    if rem:
        # < lane leftover elements: cheaper with plain jnp than padding copies.
        x = pred_f[main:].astype(jnp.float32)
        z = gt_f[main:].astype(jnp.float32)
        lbl = lbl_f[main:].astype(jnp.float32)
        e = jnp.exp(-jnp.abs(x))
        sig = jnp.where(x >= 0.0, 1.0 / (1.0 + e), e / (1.0 + e))
        weight = alpha * sig ** gamma * (1.0 - lbl) + z * lbl
        bce = jnp.maximum(x, 0.0) - x * z + jnp.log1p(e)
        loss = loss + jnp.sum(bce * weight)

    return loss


def _reference(pred_score, gt_score, label, alpha=0.75, gamma=2.0):
    x = pred_score.astype(jnp.float32)
    z = gt_score.astype(jnp.float32)
    lbl = label.astype(jnp.float32)
    weight = alpha * jax.nn.sigmoid(x) ** gamma * (1.0 - lbl) + z * lbl
    bce = jnp.maximum(x, 0.0) - x * z + jnp.log1p(jnp.exp(-jnp.abs(x)))
    return jnp.sum(bce * weight)


if __name__ == "__main__":
    key = jax.random.PRNGKey(0)
    k1, k2, k3 = jax.random.split(key, 3)

    B, A, C = 2, 64, 16  # (batch, num_anchors, num_classes)
    pred_score = jax.random.normal(k1, (B, A, C), dtype=jnp.float32) * 2.0
    gt_score = jax.random.uniform(k2, (B, A, C), dtype=jnp.float32)
    label = (jax.random.uniform(k3, (B, A, C)) > 0.8).astype(jnp.float32)
    gt_score = gt_score * label  # gt_score only nonzero where label == 1 (typical usage)

    loss = varifocal_loss(pred_score, gt_score, label)
    loss = jax.block_until_ready(loss)

    ref = _reference(pred_score, gt_score, label)
    # Tolerance accounts for the approximate (EUP) reciprocal in the sigmoid;
    # the loss is a sum of non-negative terms, so relative error stays bounded.
    assert jnp.allclose(loss, ref, rtol=2e-3, atol=2e-3), (loss, ref)

    print("KERNEL_OK")
</pallas_src>

<mosaic_0001>
module attributes {stable_mosaic.version = 11 : i64} {
  func.func @_vfl_kernel(%arg0: i32, %arg1: memref<4x512xf32, #tpu.memory_space<vmem>>, %arg2: memref<4x512xf32, #tpu.memory_space<vmem>>, %arg3: memref<4x512xf32, #tpu.memory_space<vmem>>, %arg4: memref<1x512xf32, #tpu.memory_space<vmem>>) attributes {dimension_semantics = [#tpu.dimension_semantics<parallel>], iteration_bounds = array<i64: 1>, scalar_prefetch = 0 : i64, scratch_operands = 0 : i64, tpu.core_type = #tpu.core_type<tc>, window_params = [{transform_indices = @transform_0, window_bounds = array<i64: 4, 512>}, {transform_indices = @transform_1, window_bounds = array<i64: 4, 512>}, {transform_indices = @transform_2, window_bounds = array<i64: 4, 512>}, {transform_indices = @transform_3, window_bounds = array<i64: 1, 512>}]} {
    %c0 = arith.constant 0 : index
    %c0_0 = arith.constant 0 : index
    %0 = vector.load %arg1[%c0, %c0_0] : memref<4x512xf32, #tpu.memory_space<vmem>>, vector<4x512xf32>
    %c0_1 = arith.constant 0 : index
    %c0_2 = arith.constant 0 : index
    %1 = vector.load %arg2[%c0_1, %c0_2] : memref<4x512xf32, #tpu.memory_space<vmem>>, vector<4x512xf32>
    %c0_3 = arith.constant 0 : index
    %c0_4 = arith.constant 0 : index
    %2 = vector.load %arg3[%c0_3, %c0_4] : memref<4x512xf32, #tpu.memory_space<vmem>>, vector<4x512xf32>
    %3 = math.absf %0 : vector<4x512xf32>
    %cst = arith.constant 0.000000e+00 : f32
    %4 = vector.broadcast %cst : f32 to vector<4x512xf32>
    %5 = arith.subf %4, %3 : vector<4x512xf32>
    %6 = math.exp %5 : vector<4x512xf32>
    %cst_5 = arith.constant 1.000000e+00 : f32
    %7 = vector.broadcast %cst_5 : f32 to vector<4x512xf32>
    %8 = arith.addf %7, %6 : vector<4x512xf32>
    %9 = tpu.reciprocal %8 {approx = true} : vector<4x512xf32> -> vector<4x512xf32>
    %cst_6 = arith.constant 0.000000e+00 : f32
    %10 = vector.broadcast %cst_6 : f32 to vector<4x512xf32>
    %11 = arith.cmpf oge, %0, %10 : vector<4x512xf32>
    %12 = arith.mulf %6, %9 : vector<4x512xf32>
    %13 = arith.select %11, %9, %12 : vector<4x512xi1>, vector<4x512xf32>
    %14 = arith.mulf %13, %13 : vector<4x512xf32>
    %cst_7 = arith.constant 7.500000e-01 : f32
    %15 = vector.broadcast %cst_7 : f32 to vector<4x512xf32>
    %16 = arith.mulf %15, %14 : vector<4x512xf32>
    %17 = arith.subf %1, %16 : vector<4x512xf32>
    %18 = arith.mulf %2, %17 : vector<4x512xf32>
    %19 = arith.addf %16, %18 : vector<4x512xf32>
    %cst_8 = arith.constant 0.000000e+00 : f32
    %20 = vector.broadcast %cst_8 : f32 to vector<4x512xf32>
    %21 = arith.maximumf %0, %20 : vector<4x512xf32>
    %22 = arith.mulf %0, %1 : vector<4x512xf32>
    %23 = arith.subf %21, %22 : vector<4x512xf32>
    %24 = math.log1p %6 : vector<4x512xf32>
    %25 = arith.addf %23, %24 : vector<4x512xf32>
    %26 = arith.mulf %25, %19 : vector<4x512xf32>
    %cst_9 = arith.constant dense<0.000000e+00> : vector<512xf32>
    %27 = vector.multi_reduction <add>, %26, %cst_9 [0] : vector<4x512xf32> to vector<512xf32>
    %28 = vector.shape_cast %27 : vector<512xf32> to vector<1x512xf32>
    %c0_10 = arith.constant 0 : index
    %c0_11 = arith.constant 0 : index
    %29 = vector.load %arg4[%c0_10, %c0_11] : memref<1x512xf32, #tpu.memory_space<vmem>>, vector<1x512xf32>
    tpu.vector_store %arg4[%c0_10, %c0_11], %28 {strides = array<i32>} : memref<1x512xf32, #tpu.memory_space<vmem>>, vector<1x512xf32>,
    return
  }
  func.func @transform_0(%arg0: i32) -> (i32, i32) {
    %c0_i32 = arith.constant 0 : i32
    %c0_i32_0 = arith.constant 0 : i32
    return %arg0, %c0_i32 : i32, i32
  }
  func.func @transform_1(%arg0: i32) -> (i32, i32) {
    %c0_i32 = arith.constant 0 : i32
    %c0_i32_0 = arith.constant 0 : i32
    return %arg0, %c0_i32 : i32, i32
  }
  func.func @transform_2(%arg0: i32) -> (i32, i32) {
    %c0_i32 = arith.constant 0 : i32
    %c0_i32_0 = arith.constant 0 : i32
    return %arg0, %c0_i32 : i32, i32
  }
  func.func @transform_3(%arg0: i32) -> (i32, i32) {
    %c0_i32 = arith.constant 0 : i32
    %c0_i32_0 = arith.constant 0 : i32
    return %arg0, %c0_i32 : i32, i32
  }
}

</mosaic_0001>

<llo_original>
// kernel: tpu_custom_call.1
$region0: #{tpu_custom_call.1}
  #allocation0 [shape = 'u32[]', space=smem, size = 0x4, offset = 0x4, fixed_abs, tag = 'smem constant byte address 0x4 - core index']
  #allocation1 [shape = 'u32[144,128]{1,0:T(1,128)}', space=vmem, size = 0x12000, scoped, tag = 'internal scratch']
  %s0 = inlined_call_operand.hbm [shape: f32[4,512], index: 0, kind: input, shape index: {}]
  %s1 = inlined_call_operand.hbm [shape: f32[4,512], index: 1, kind: input, shape index: {}]
  %s2 = inlined_call_operand.hbm [shape: f32[4,512], index: 2, kind: input, shape index: {}]
  %s3 = inlined_call_operand.hbm [shape: f32[1,512], index: 3, kind: output, shape index: {}]
  %s4 = sld [smem:[#allocation0]]
  $region34: #{tpu_custom_call.1} parent=0
    _
  %s6 = ssub.s32 1, %s4
  %s7 = scalar_select 0, %s6, %s4
  $region1: #{tpu_custom_call.1} parent=0
    #allocation2 [shape = 'u8[8192]{0}', space=vmem, size = 0x2000, scoped, tag = 'input window, operand 0, single buffered']
    #allocation3 [shape = 's32[1]{0}', space=sflag, size = 0x4, scoped, tag = 'scoped memory for tpu_custom_call.1']
    #allocation4 [shape = 's32[1]{0}', space=sflag, size = 0x4, scoped, tag = 'scoped memory for tpu_custom_call.1']
    #allocation5 [shape = 'u8[8192]{0}', space=vmem, size = 0x2000, scoped, tag = 'input window, operand 1, single buffered']
    #allocation6 [shape = 's32[1]{0}', space=sflag, size = 0x4, scoped, tag = 'scoped memory for tpu_custom_call.1']
    #allocation7 [shape = 'u8[8192]{0}', space=vmem, size = 0x2000, scoped, tag = 'input window, operand 2, single buffered']
    #allocation8 [shape = 'u8[2048]{0}', space=vmem, size = 0x800, scoped, tag = 'output window, operand 0, single buffered']
    %8 = vsyncpa [#allocation3], 0
    %9 = vsyncpa [#allocation6], 0
    %10 = vsyncpa [#allocation4], 0
    // Predicated region
    $region2: #{tpu_custom_call.1} parent=1 // pred_check
      _
    $region3: #{tpu_custom_call.1} parent=1 // pred_check_branch
      %12 = sbr.rel (0) target = $region5
    $region4: #{tpu_custom_call.1} parent=1 // pred_region
      %s14 = ssub.s32 256, 256
      %15 = vsyncadd [#allocation3], %s14
      %s17 = sshll.u32 [#allocation2], 4
      %s18 = int_to_ptr.vmem [resolvable:$true] %s17
      %20 = dma.hbm_to_vmem [thread:$0]  %s0, 256, %s18, [#allocation3]
    $region5: #{tpu_custom_call.1} parent=1 // pred_fallthru
      _
    // Predicated region
    $region6: #{tpu_custom_call.1} parent=1 // pred_check
      _
    $region7: #{tpu_custom_call.1} parent=1 // pred_check_branch
      %22 = sbr.rel (0) target = $region9
    $region8: #{tpu_custom_call.1} parent=1 // pred_region
      %s24 = ssub.s32 256, 256
      %25 = vsyncadd [#allocation6], %s24
      %s27 = sshll.u32 [#allocation5], 4
      %s28 = int_to_ptr.vmem [resolvable:$true] %s27
      %30 = dma.hbm_to_vmem [thread:$0]  %s1, 256, %s28, [#allocation6]
    $region9: #{tpu_custom_call.1} parent=1 // pred_fallthru
      _
    // Predicated region
    $region10: #{tpu_custom_call.1} parent=1 // pred_check
      _
    $region11: #{tpu_custom_call.1} parent=1 // pred_check_branch
      %32 = sbr.rel (0) target = $region13
    $region12: #{tpu_custom_call.1} parent=1 // pred_region
      %s34 = ssub.s32 256, 256
      %35 = vsyncadd [#allocation6], %s34
      %s37 = sshll.u32 [#allocation7], 4
      %s38 = int_to_ptr.vmem [resolvable:$true] %s37
      %40 = dma.hbm_to_vmem [thread:$0]  %s2, 256, %s38, [#allocation6]
    $region13: #{tpu_custom_call.1} parent=1 // pred_fallthru
      _
    // Predicated region
    $region14: #{tpu_custom_call.1} parent=1 // pred_check
      _
    $region15: #{tpu_custom_call.1} parent=1 // pred_check_branch
      %42 = sbr.rel (0) target = $region17
    $region16: #{tpu_custom_call.1} parent=1 // pred_region
      %43 = dma.done [#allocation3], 256
    $region17: #{tpu_custom_call.1} parent=1 // pred_fallthru
      _
    // Predicated region
    $region18: #{tpu_custom_call.1} parent=1 // pred_check
      _
    $region19: #{tpu_custom_call.1} parent=1 // pred_check_branch
      %45 = sbr.rel (0) target = $region21
    $region20: #{tpu_custom_call.1} parent=1 // pred_region
      %46 = dma.done [#allocation6], 256
    $region21: #{tpu_custom_call.1} parent=1 // pred_fallthru
      _
    // Predicated region
    $region22: #{tpu_custom_call.1} parent=1 // pred_check
      _
    $region23: #{tpu_custom_call.1} parent=1 // pred_check_branch
      %48 = sbr.rel (0) target = $region25
    $region24: #{tpu_custom_call.1} parent=1 // pred_region
      %49 = dma.done [#allocation6], 256
    $region25: #{tpu_custom_call.1} parent=1 // pred_fallthru
      _
    %v50 = vld [vmem:[#allocation2] sm:$0xff]
    %v51 = vld [vmem:[#allocation2 + $0x8] sm:$0xff]
    %v52 = vld [vmem:[#allocation5] sm:$0xff]
    %v53 = vld [vmem:[#allocation5 + $0x8] sm:$0xff]
    %v54 = vld [vmem:[#allocation7] sm:$0xff]
    %v55 = vld [vmem:[#allocation7 + $0x8] sm:$0xff]
    %v56 = vand.u32 2147483647, %v50
    %v57 = vand.u32 2147483647, %v51
    %v58 = vsub.f32 0.0, %v56
    %v59 = vsub.f32 0.0, %v57
    %v60 = vmul.f32 %v58, 1.442695
    %v61 = vpow.pop %v60
    %v62 = vmul.f32 %v59, 1.442695
    %v63 = vpow.pop %v62
    %v64 = vadd.f32 %v61, 1.0
    %v65 = vadd.f32 %v63, 1.0
    %v66 = vrcp.pop %v64
    %v67 = vrcp.pop %v65
    %vm68 = vcmp.ge.f32.partialorder %v50, 0.0
    %vm69 = vcmp.ge.f32.partialorder %v51, 0.0
    %v70 = vmul.f32 %v61, %v66
    %v71 = vmul.f32 %v63, %v67
    %v72 = vsel %vm68, %v66, %v70
    %v73 = vsel %vm69, %v67, %v71
    %v74 = vmul.f32 %v72, %v72
    %v75 = vmul.f32 %v73, %v73
    %v76 = vmul.f32 %v74, 0.75
    %v77 = vmul.f32 %v75, 0.75
    %v78 = vsub.f32 %v52, %v76
    %v79 = vsub.f32 %v53, %v77
    %v80 = vmul.f32 %v54, %v78
    %v81 = vmul.f32 %v55, %v79
    %v82 = vadd.f32 %v76, %v80
    %v83 = vadd.f32 %v77, %v81
    %v84 = vmax.f32 %v50, 0.0
    %v85 = vmax.f32 %v51, 0.0
    %v86 = vmul.f32 %v50, %v52
    %v87 = vmul.f32 %v51, %v53
    %v88 = vsub.f32 %v84, %v86
    %v89 = vsub.f32 %v85, %v87
    %v90 = vadd.f32 %v61, 1.0
    %v91 = vlog2.pop %v90
    %v92 = vmul.f32 %v91, 0.6931472
    %v93 = vmul.f32 -0.5, %v61
    %v94 = vadd.f32 %v93, 1.0
    %v95 = vmul.f32 %v94, %v61
    %v96 = vand.u32 2147483647, %v61
    %vm97 = vcmp.lt.f32.partialorder %v96, 0.0004427343
    %v98 = vsel %vm97, %v95, %v92
    %v99 = vadd.f32 %v63, 1.0
    %v100 = vlog2.pop %v99
    %v101 = vmul.f32 %v100, 0.6931472
    %v102 = vmul.f32 -0.5, %v63
    %v103 = vadd.f32 %v102, 1.0
    %v104 = vmul.f32 %v103, %v63
    %v105 = vand.u32 2147483647, %v63
    %vm106 = vcmp.lt.f32.partialorder %v105, 0.0004427343
    %v107 = vsel %vm106, %v104, %v101
    %v108 = vadd.f32 %v88, %v98
    %v109 = vadd.f32 %v89, %v107
    %v110 = vmul.f32 %v108, %v82
    %v111 = vmul.f32 %v109, %v83
    %v114 = vcombine.high %v110, %v110
    %v115 = vcombine.high %v111, %v111
    %vm118 = vcmask 1043456
    %v119 = vsel %vm118, %v110, 0.0
    %v120 = vrot.slane %v119, 4
    %v121 = vadd.f32 %v119, %v120
    %v122 = vrot.slane %v121, 2
    %v123 = vadd.f32 %v121, %v122
    %v124 = vrot.slane %v123, 1
    %v125 = vadd.f32 %v123, %v124
    %v126 = vsel %vm118, %v114, 0.0
    %v127 = vrot.slane %v126, 4
    %v128 = vadd.f32 %v126, %v127
    %v129 = vrot.slane %v128, 2
    %v130 = vadd.f32 %v128, %v129
    %v131 = vrot.slane %v130, 1
    %v132 = vadd.f32 %v130, %v131
    %v133 = vsel %vm118, %v111, 0.0
    %v134 = vrot.slane %v133, 4
    %v135 = vadd.f32 %v133, %v134
    %v136 = vrot.slane %v135, 2
    %v137 = vadd.f32 %v135, %v136
    %v138 = vrot.slane %v137, 1
    %v139 = vadd.f32 %v137, %v138
    %v140 = vsel %vm118, %v115, 0.0
    %v141 = vrot.slane %v140, 4
    %v142 = vadd.f32 %v140, %v141
    %v143 = vrot.slane %v142, 2
    %v144 = vadd.f32 %v142, %v143
    %v145 = vrot.slane %v144, 1
    %v146 = vadd.f32 %v144, %v145
    %v151 = vcombine.low %v125, %v132
    %v152 = vcombine.low %v139, %v146
    %v154 = vunpack.c.l.s4 1966171168
    %v155 = vunpack.c.0.s8 %v154
    %v156 = vlaneseq
    %v157 = vshrl.u32 %v156, 7
    %v158 = vsub.s32 %v155, %v157
    %v159 = vrot.slane %v151, %v158
    %v161 = vunpack.c.l.s4 1966171168
    %v162 = vunpack.c.0.s8 %v161
    %v163 = vlaneseq
    %v164 = vshrl.u32 %v163, 7
    %v165 = vsub.s32 %v162, %v164
    %v166 = vrot.slane %v152, %v165
    %v167 = vcombine.low %v159, %v166
    %v169 = vunpack.c.l.s4 1966171168
    %v170 = vunpack.c.0.s8 %v169
    %v171 = vlaneseq
    %v172 = vshrl.u32 %v171, 7
    %v173 = vsub.s32 %v170, %v172
    %v174 = vrot.slane %v167, %v173
    %v176 = vlaneseq
    %vm177 = vcmp.ge.s32.totalorder %v176, 0
    %vm178 = vcmp.lt.s32.totalorder %v176, 512
    %vm179 = vmand %vm177, %vm178
    %180 = vst.msk [vmem:[#allocation8] sm:$0xf] %vm179, %v174
    // Predicated region
    $region26: #{tpu_custom_call.1} parent=1 // pred_check
      _
    $region27: #{tpu_custom_call.1} parent=1 // pred_check_branch
      %182 = sbr.rel (0) target = $region29
    $region28: #{tpu_custom_call.1} parent=1 // pred_region
      %s184 = ssub.s32 64, 64
      %185 = vsyncadd [#allocation4], %s184
      %s187 = sshll.u32 [#allocation8], 4
      %s188 = int_to_ptr.vmem [resolvable:$true] %s187
      %190 = dma.vmem_to_hbm [thread:$0]  %s188, 64, %s3, [#allocation4]
    $region29: #{tpu_custom_call.1} parent=1 // pred_fallthru
      _
    // Predicated region
    $region30: #{tpu_custom_call.1} parent=1 // pred_check
      _
    $region31: #{tpu_custom_call.1} parent=1 // pred_check_branch
      %192 = sbr.rel (0) target = $region33
    $region32: #{tpu_custom_call.1} parent=1 // pred_region
      %193 = dma.done [#allocation4], 64
    $region33: #{tpu_custom_call.1} parent=1 // pred_fallthru
      _
    %194 = vsyncpa [#allocation3], 1
    %195 = vsyncpa [#allocation6], 1
    %196 = vsyncpa [#allocation4], 1

</llo_original>
